<compile_context>
chip_gen: v7x
topology: tpu7x:2x2x1
jax: 0.10.0
libtpu: 0.0.40
codegen_flags: <defaults>
</compile_context>

<pallas_src>
import functools

import jax
import jax.numpy as jnp
from jax.experimental import pallas as pl
from jax.experimental.pallas import tpu as pltpu


def _round_up(v, m):
    return (v + m - 1) // m * m


def _pick_pixel_tile(hw, target=512):
    """Largest divisor of hw that is a multiple of 8 and <= target (fallback: hw)."""
    best = None
    t = 8
    while t <= min(hw, target):
        if hw % t == 0:
            best = t
        t += 8
    return best if best is not None else hw


def _simclr_kernel(x_ref, wc_ref, bc_ref, w1_ref, b1_ref, w2_ref, b2_ref,
                   o_ref, acc_ref, *, c_in, inv_hw, small_c):
    """One grid step = one (sample, pixel-tile).

    Grid = (batch, pixel_tiles).  The pixel axis is the pooling reduction:
    partial sums go into the f32 VMEM accumulator; the projection head runs
    only on the last pixel tile of each sample.
    """
    t = pl.program_id(1)

    @pl.when(t == 0)
    def _init():
        acc_ref[...] = jnp.zeros_like(acc_ref)

    xb = x_ref[0]                                        # (TP, C) bf16

    # ---- backbone: 1x1 conv + bias + ReLU on this pixel tile ----
    # For tiny C the MXU would run at ~C/256 utilization, so do the channel
    # contraction as C broadcast-FMAs on the VPU; large C uses a bf16 MXU dot.
    if small_c:
        xf = xb.astype(jnp.float32)
        wc = wc_ref[...].astype(jnp.float32)             # (C, MP)
        h = xf[:, 0:1] * wc[0:1, :]
        for c in range(1, c_in):
            h = h + xf[:, c:c + 1] * wc[c:c + 1, :]
    else:
        h = jnp.dot(xb, wc_ref[...], preferred_element_type=jnp.float32)
    h = jnp.maximum(h + bc_ref[...], 0.0)                # (TP, MP) f32

    # ---- global average pool: accumulate per-tile partial sums ----
    acc_ref[...] += jnp.sum(h, axis=0, keepdims=True)    # (1, MP)

    # ---- projection head: Linear -> ReLU -> Linear (last tile only) ----
    @pl.when(t == pl.num_programs(1) - 1)
    def _finish():
        feats = acc_ref[...] * inv_hw                    # mean pool, (1, MP)
        w1 = w1_ref[...].astype(jnp.float32)
        z = jnp.dot(feats, w1, preferred_element_type=jnp.float32) + b1_ref[...]
        z = jnp.maximum(z, 0.0)
        w2 = w2_ref[...].astype(jnp.float32)
        out = jnp.dot(z, w2, preferred_element_type=jnp.float32) + b2_ref[...]
        o_ref[0] = out.astype(o_ref.dtype)               # (1, EP)


def simclr_forward(x_nchw, params, *, pixel_tile=None):
    """x_nchw: (N, C, H, W) float32.  Returns (N, embedding_size) float32."""
    wc, bc, w1, b1, w2, b2 = params
    N, C, H, W = x_nchw.shape
    HW = H * W
    mlp_dim = wc.shape[1]
    emb = w2.shape[1]
    MP = _round_up(mlp_dim, 128)      # lane-dense hidden width
    EP = _round_up(emb, 128)          # lane-dense output width

    if pixel_tile is None:
        pixel_tile = _pick_pixel_tile(HW)
    assert HW % pixel_tile == 0, (HW, pixel_tile)
    n_pt = HW // pixel_tile

    # NCHW -> (N, HW, C), bf16 at the boundary (halves HBM traffic).
    x_nhwc = jnp.transpose(x_nchw, (0, 2, 3, 1)).reshape(N, HW, C)
    x_bf16 = x_nhwc.astype(jnp.bfloat16)

    # Zero-pad feature dims to multiples of 128 (padded columns stay exactly 0
    # through ReLU / pooling / head, sliced away at the end).
    wc_p = jnp.zeros((C, MP), jnp.bfloat16).at[:, :mlp_dim].set(
        wc.astype(jnp.bfloat16))
    bc_p = jnp.zeros((1, MP), jnp.float32).at[:, :mlp_dim].set(bc)
    w1_p = jnp.zeros((MP, MP), jnp.bfloat16).at[:mlp_dim, :mlp_dim].set(
        w1.astype(jnp.bfloat16))
    b1_p = jnp.zeros((1, MP), jnp.float32).at[:, :mlp_dim].set(b1)
    w2_p = jnp.zeros((MP, EP), jnp.bfloat16).at[:mlp_dim, :emb].set(
        w2.astype(jnp.bfloat16))
    b2_p = jnp.zeros((1, EP), jnp.float32).at[:, :emb].set(b2)

    kernel = functools.partial(
        _simclr_kernel, c_in=C, inv_hw=1.0 / HW, small_c=(C <= 16))

    const = lambda b, t: (0, 0)   # weights: loaded once, VMEM-resident

    out = pl.pallas_call(
        kernel,
        out_shape=jax.ShapeDtypeStruct((N, 1, EP), jnp.float32),
        grid_spec=pltpu.PrefetchScalarGridSpec(
            num_scalar_prefetch=0,
            grid=(N, n_pt),
            in_specs=[
                pl.BlockSpec((1, pixel_tile, C), lambda b, t: (b, t, 0)),  # x
                pl.BlockSpec((C, MP), const),     # conv weight
                pl.BlockSpec((1, MP), const),     # conv bias
                pl.BlockSpec((MP, MP), const),    # head W1
                pl.BlockSpec((1, MP), const),     # head b1
                pl.BlockSpec((MP, EP), const),    # head W2
                pl.BlockSpec((1, EP), const),     # head b2
            ],
            out_specs=pl.BlockSpec((1, 1, EP), lambda b, t: (b, 0, 0)),
            scratch_shapes=[pltpu.VMEM((1, MP), jnp.float32)],  # pooled acc
        ),
        compiler_params=pltpu.CompilerParams(
            dimension_semantics=("parallel", "arbitrary"),
            vmem_limit_bytes=32 * 1024 * 1024,
        ),
    )(x_bf16, wc_p, bc_p, w1_p, b1_p, w2_p, b2_p)

    return out.reshape(N, EP)[:, :emb]


def init_params(key, c_in, mlp_dim, embedding_size):
    """Deterministic synthetic parameters (no checkpoint loading)."""
    k = jax.random.split(key, 6)
    wc = jax.random.normal(k[0], (c_in, mlp_dim), jnp.float32) * 0.1
    bc = jax.random.normal(k[1], (mlp_dim,), jnp.float32) * 0.01
    w1 = jax.random.normal(k[2], (mlp_dim, mlp_dim), jnp.float32) * 0.1
    b1 = jax.random.normal(k[3], (mlp_dim,), jnp.float32) * 0.01
    w2 = jax.random.normal(k[4], (mlp_dim, embedding_size), jnp.float32) * 0.1
    b2 = jax.random.normal(k[5], (embedding_size,), jnp.float32) * 0.01
    return (wc, bc, w1, b1, w2, b2)


def simclr_reference(x_nchw, params):
    """Pure-JAX reference mirroring the forward semantics (and bf16 casts)."""
    wc, bc, w1, b1, w2, b2 = params
    N, C, H, W = x_nchw.shape
    x = jnp.transpose(x_nchw, (0, 2, 3, 1)).reshape(N, H * W, C)
    xf = x.astype(jnp.bfloat16).astype(jnp.float32)
    wcf = wc.astype(jnp.bfloat16).astype(jnp.float32)
    h = jnp.maximum(jnp.einsum("npc,cm->npm", xf, wcf) + bc, 0.0)
    feats = h.mean(axis=1)                               # (N, mlp_dim)
    w1f = w1.astype(jnp.bfloat16).astype(jnp.float32)
    w2f = w2.astype(jnp.bfloat16).astype(jnp.float32)
    z = jnp.maximum(feats @ w1f + b1, 0.0)
    return z @ w2f + b2


if __name__ == "__main__":
    # Small shapes consistent with the module: batch=2, channels=4, spatial
    # 16x16, backbone feature dim (mlp_dim)=32, embedding_size=16.
    N, C, H, W = 2, 4, 16, 16
    MLP_DIM, EMB = 32, 16

    key = jax.random.PRNGKey(0)
    kx, kp = jax.random.split(key)
    x = jax.random.normal(kx, (N, C, H, W), jnp.float32)
    params = init_params(kp, C, MLP_DIM, EMB)

    # pixel_tile=64 -> grid (N=2, 4 pixel tiles): exercises zero / accumulate /
    # finalize across the pooling axis.
    out = simclr_forward(x, params, pixel_tile=64)
    out = jax.block_until_ready(out)

    ref = simclr_reference(x, params)
    assert out.shape == (N, EMB), out.shape
    assert jnp.allclose(out, ref, atol=1e-3, rtol=1e-3), "mismatch vs reference"

    # TODO(synk): the reference module accepts an arbitrary backbone; only a
    # minimal 1x1-conv + global-average-pool backbone matching the .fc
    # contract is synthesized here.
    print("KERNEL_OK")
</pallas_src>

<mosaic_0001>
module attributes {stable_mosaic.version = 11 : i64} {
  func.func @_simclr_kernel(%arg0: i32, %arg1: i32, %arg2: memref<1x64x4xbf16, #tpu.memory_space<vmem>>, %arg3: memref<4x128xbf16, #tpu.memory_space<vmem>>, %arg4: memref<1x128xf32, #tpu.memory_space<vmem>>, %arg5: memref<128x128xbf16, #tpu.memory_space<vmem>>, %arg6: memref<1x128xf32, #tpu.memory_space<vmem>>, %arg7: memref<128x128xbf16, #tpu.memory_space<vmem>>, %arg8: memref<1x128xf32, #tpu.memory_space<vmem>>, %arg9: memref<1x1x128xf32, #tpu.memory_space<vmem>>, %arg10: memref<1x128xf32, #tpu.memory_space<vmem>>) attributes {dimension_semantics = [#tpu.dimension_semantics<parallel>, #tpu.dimension_semantics<arbitrary>], iteration_bounds = array<i64: 2, 4>, scalar_prefetch = 0 : i64, scratch_operands = 1 : i64, tpu.core_type = #tpu.core_type<tc>, window_params = [{transform_indices = @transform_0, window_bounds = array<i64: 1, 64, 4>}, {pipeline_mode = #tpu.pipeline_mode<synchronous>, transform_indices = @transform_1, window_bounds = array<i64: 4, 128>}, {pipeline_mode = #tpu.pipeline_mode<synchronous>, transform_indices = @transform_2, window_bounds = array<i64: 1, 128>}, {pipeline_mode = #tpu.pipeline_mode<synchronous>, transform_indices = @transform_3, window_bounds = array<i64: 128, 128>}, {pipeline_mode = #tpu.pipeline_mode<synchronous>, transform_indices = @transform_4, window_bounds = array<i64: 1, 128>}, {pipeline_mode = #tpu.pipeline_mode<synchronous>, transform_indices = @transform_5, window_bounds = array<i64: 128, 128>}, {pipeline_mode = #tpu.pipeline_mode<synchronous>, transform_indices = @transform_6, window_bounds = array<i64: 1, 128>}, {transform_indices = @transform_7, window_bounds = array<i64: 1, 1, 128>}]} {
    %c0_i32 = arith.constant 0 : i32
    %0 = arith.cmpi eq, %arg1, %c0_i32 : i32
    %1 = arith.extui %0 : i1 to i32
    %c0_i32_0 = arith.constant 0 : i32
    %2 = arith.cmpi ne, %1, %c0_i32_0 : i32
    scf.if %2 {
      %cst_13 = arith.constant 0.000000e+00 : f32
      %44 = vector.broadcast %cst_13 : f32 to vector<1x128xf32>
      %c0_14 = arith.constant 0 : index
      %c0_15 = arith.constant 0 : index
      %45 = vector.load %arg10[%c0_14, %c0_15] : memref<1x128xf32, #tpu.memory_space<vmem>>, vector<1x128xf32>
      tpu.vector_store %arg10[%c0_14, %c0_15], %44 {strides = array<i32>} : memref<1x128xf32, #tpu.memory_space<vmem>>, vector<1x128xf32>,
    } else {
    }
    %c0 = arith.constant 0 : index
    %c0_1 = arith.constant 0 : index
    %c0_2 = arith.constant 0 : index
    %3 = vector.load %arg2[%c0, %c0_1, %c0_2] : memref<1x64x4xbf16, #tpu.memory_space<vmem>>, vector<1x64x4xbf16>
    %4 = vector.shape_cast %3 : vector<1x64x4xbf16> to vector<64x4xbf16>
    %5 = arith.extf %4 : vector<64x4xbf16> to vector<64x4xf32>
    %c0_3 = arith.constant 0 : index
    %c0_4 = arith.constant 0 : index
    %6 = vector.load %arg3[%c0_3, %c0_4] : memref<4x128xbf16, #tpu.memory_space<vmem>>, vector<4x128xbf16>
    %7 = arith.extf %6 : vector<4x128xbf16> to vector<4x128xf32>
    %8 = vector.extract_strided_slice %5 {offsets = [0, 0], sizes = [64, 1], strides = [1, 1]} : vector<64x4xf32> to vector<64x1xf32>
    %9 = vector.extract_strided_slice %7 {offsets = [0, 0], sizes = [1, 128], strides = [1, 1]} : vector<4x128xf32> to vector<1x128xf32>
    %10 = vector.broadcast %8 : vector<64x1xf32> to vector<64x128xf32>
    %11 = vector.broadcast %9 : vector<1x128xf32> to vector<64x128xf32>
    %12 = arith.mulf %10, %11 : vector<64x128xf32>
    %13 = vector.extract_strided_slice %5 {offsets = [0, 1], sizes = [64, 1], strides = [1, 1]} : vector<64x4xf32> to vector<64x1xf32>
    %14 = vector.extract_strided_slice %7 {offsets = [1, 0], sizes = [1, 128], strides = [1, 1]} : vector<4x128xf32> to vector<1x128xf32>
    %15 = vector.broadcast %13 : vector<64x1xf32> to vector<64x128xf32>
    %16 = vector.broadcast %14 : vector<1x128xf32> to vector<64x128xf32>
    %17 = arith.mulf %15, %16 : vector<64x128xf32>
    %18 = arith.addf %12, %17 : vector<64x128xf32>
    %19 = vector.extract_strided_slice %5 {offsets = [0, 2], sizes = [64, 1], strides = [1, 1]} : vector<64x4xf32> to vector<64x1xf32>
    %20 = vector.extract_strided_slice %7 {offsets = [2, 0], sizes = [1, 128], strides = [1, 1]} : vector<4x128xf32> to vector<1x128xf32>
    %21 = vector.broadcast %19 : vector<64x1xf32> to vector<64x128xf32>
    %22 = vector.broadcast %20 : vector<1x128xf32> to vector<64x128xf32>
    %23 = arith.mulf %21, %22 : vector<64x128xf32>
    %24 = arith.addf %18, %23 : vector<64x128xf32>
    %25 = vector.extract_strided_slice %5 {offsets = [0, 3], sizes = [64, 1], strides = [1, 1]} : vector<64x4xf32> to vector<64x1xf32>
    %26 = vector.extract_strided_slice %7 {offsets = [3, 0], sizes = [1, 128], strides = [1, 1]} : vector<4x128xf32> to vector<1x128xf32>
    %27 = vector.broadcast %25 : vector<64x1xf32> to vector<64x128xf32>
    %28 = vector.broadcast %26 : vector<1x128xf32> to vector<64x128xf32>
    %29 = arith.mulf %27, %28 : vector<64x128xf32>
    %30 = arith.addf %24, %29 : vector<64x128xf32>
    %c0_5 = arith.constant 0 : index
    %c0_6 = arith.constant 0 : index
    %31 = vector.load %arg4[%c0_5, %c0_6] : memref<1x128xf32, #tpu.memory_space<vmem>>, vector<1x128xf32>
    %32 = vector.broadcast %31 : vector<1x128xf32> to vector<64x128xf32>
    %33 = arith.addf %30, %32 : vector<64x128xf32>
    %cst = arith.constant 0.000000e+00 : f32
    %34 = vector.broadcast %cst : f32 to vector<64x128xf32>
    %35 = arith.maximumf %33, %34 : vector<64x128xf32>
    %c0_7 = arith.constant 0 : index
    %c0_8 = arith.constant 0 : index
    %36 = vector.load %arg10[%c0_7, %c0_8] : memref<1x128xf32, #tpu.memory_space<vmem>>, vector<1x128xf32>
    %cst_9 = arith.constant dense<0.000000e+00> : vector<128xf32>
    %37 = vector.multi_reduction <add>, %35, %cst_9 [0] : vector<64x128xf32> to vector<128xf32>
    %38 = vector.shape_cast %37 : vector<128xf32> to vector<1x128xf32>
    %39 = arith.addf %36, %38 : vector<1x128xf32>
    %c0_10 = arith.constant 0 : index
    %c0_11 = arith.constant 0 : index
    %40 = vector.load %arg10[%c0_10, %c0_11] : memref<1x128xf32, #tpu.memory_space<vmem>>, vector<1x128xf32>
    tpu.vector_store %arg10[%c0_10, %c0_11], %39 {strides = array<i32>} : memref<1x128xf32, #tpu.memory_space<vmem>>, vector<1x128xf32>,
    %c3_i32 = arith.constant 3 : i32
    %41 = arith.cmpi eq, %arg1, %c3_i32 : i32
    %42 = arith.extui %41 : i1 to i32
    %c0_i32_12 = arith.constant 0 : i32
    %43 = arith.cmpi ne, %42, %c0_i32_12 : i32
    scf.if %43 {
      %c0_13 = arith.constant 0 : index
      %c0_14 = arith.constant 0 : index
      %44 = vector.load %arg10[%c0_13, %c0_14] : memref<1x128xf32, #tpu.memory_space<vmem>>, vector<1x128xf32>
      %cst_15 = arith.constant 3.906250e-03 : f32
      %45 = vector.broadcast %cst_15 : f32 to vector<1x128xf32>
      %46 = arith.mulf %44, %45 : vector<1x128xf32>
      %c0_16 = arith.constant 0 : index
      %c0_17 = arith.constant 0 : index
      %47 = vector.load %arg5[%c0_16, %c0_17] : memref<128x128xbf16, #tpu.memory_space<vmem>>, vector<128x128xbf16>
      %48 = arith.extf %47 : vector<128x128xbf16> to vector<128x128xf32>
      %cst_18 = arith.constant dense<0.000000e+00> : vector<1x128xf32>
      %49 = tpu.matmul %46, %48, %cst_18 {dimension_numbers = #tpu.dot_dimension_numbers<[1], [0], [0], [1], [0, 0, 1, 1], [], []>} : vector<1x128xf32>, vector<128x128xf32>, vector<1x128xf32> -> vector<1x128xf32>
      %c0_19 = arith.constant 0 : index
      %c0_20 = arith.constant 0 : index
      %50 = vector.load %arg6[%c0_19, %c0_20] : memref<1x128xf32, #tpu.memory_space<vmem>>, vector<1x128xf32>
      %51 = arith.addf %49, %50 : vector<1x128xf32>
      %cst_21 = arith.constant 0.000000e+00 : f32
      %52 = vector.broadcast %cst_21 : f32 to vector<1x128xf32>
      %53 = arith.maximumf %51, %52 : vector<1x128xf32>
      %c0_22 = arith.constant 0 : index
      %c0_23 = arith.constant 0 : index
      %54 = vector.load %arg7[%c0_22, %c0_23] : memref<128x128xbf16, #tpu.memory_space<vmem>>, vector<128x128xbf16>
      %55 = arith.extf %54 : vector<128x128xbf16> to vector<128x128xf32>
      %cst_24 = arith.constant dense<0.000000e+00> : vector<1x128xf32>
      %56 = tpu.matmul %53, %55, %cst_24 {dimension_numbers = #tpu.dot_dimension_numbers<[1], [0], [0], [1], [0, 0, 1, 1], [], []>} : vector<1x128xf32>, vector<128x128xf32>, vector<1x128xf32> -> vector<1x128xf32>
      %c0_25 = arith.constant 0 : index
      %c0_26 = arith.constant 0 : index
      %57 = vector.load %arg8[%c0_25, %c0_26] : memref<1x128xf32, #tpu.memory_space<vmem>>, vector<1x128xf32>
      %58 = arith.addf %56, %57 : vector<1x128xf32>
      %c0_27 = arith.constant 0 : index
      %c0_28 = arith.constant 0 : index
      %c0_29 = arith.constant 0 : index
      %59 = vector.load %arg9[%c0_27, %c0_28, %c0_29] : memref<1x1x128xf32, #tpu.memory_space<vmem>>, vector<1x1x128xf32>
      %60 = vector.shape_cast %59 : vector<1x1x128xf32> to vector<1x128xf32>
      %61 = vector.shape_cast %58 : vector<1x128xf32> to vector<1x1x128xf32>
      tpu.vector_store %arg9[%c0_27, %c0_28, %c0_29], %61 {strides = array<i32>} : memref<1x1x128xf32, #tpu.memory_space<vmem>>, vector<1x1x128xf32>,
    } else {
    }
    return
  }
  func.func @transform_0(%arg0: i32, %arg1: i32) -> (i32, i32, i32) {
    %c0_i32 = arith.constant 0 : i32
    %c0_i32_0 = arith.constant 0 : i32
    return %arg0, %arg1, %c0_i32 : i32, i32, i32
  }
  func.func @transform_1(%arg0: i32, %arg1: i32) -> (i32, i32) {
    %c0_i32 = arith.constant 0 : i32
    %c0_i32_0 = arith.constant 0 : i32
    %c0_i32_1 = arith.constant 0 : i32
    return %c0_i32, %c0_i32_0 : i32, i32
  }
  func.func @transform_2(%arg0: i32, %arg1: i32) -> (i32, i32) {
    %c0_i32 = arith.constant 0 : i32
    %c0_i32_0 = arith.constant 0 : i32
    %c0_i32_1 = arith.constant 0 : i32
    return %c0_i32, %c0_i32_0 : i32, i32
  }
  func.func @transform_3(%arg0: i32, %arg1: i32) -> (i32, i32) {
    %c0_i32 = arith.constant 0 : i32
    %c0_i32_0 = arith.constant 0 : i32
    %c0_i32_1 = arith.constant 0 : i32
    return %c0_i32, %c0_i32_0 : i32, i32
  }
  func.func @transform_4(%arg0: i32, %arg1: i32) -> (i32, i32) {
    %c0_i32 = arith.constant 0 : i32
    %c0_i32_0 = arith.constant 0 : i32
    %c0_i32_1 = arith.constant 0 : i32
    return %c0_i32, %c0_i32_0 : i32, i32
  }
  func.func @transform_5(%arg0: i32, %arg1: i32) -> (i32, i32) {
    %c0_i32 = arith.constant 0 : i32
    %c0_i32_0 = arith.constant 0 : i32
    %c0_i32_1 = arith.constant 0 : i32
    return %c0_i32, %c0_i32_0 : i32, i32
  }
  func.func @transform_6(%arg0: i32, %arg1: i32) -> (i32, i32) {
    %c0_i32 = arith.constant 0 : i32
    %c0_i32_0 = arith.constant 0 : i32
    %c0_i32_1 = arith.constant 0 : i32
    return %c0_i32, %c0_i32_0 : i32, i32
  }
  func.func @transform_7(%arg0: i32, %arg1: i32) -> (i32, i32, i32) {
    %c0_i32 = arith.constant 0 : i32
    %c0_i32_0 = arith.constant 0 : i32
    %c0_i32_1 = arith.constant 0 : i32
    return %arg0, %c0_i32, %c0_i32_0 : i32, i32, i32
  }
}

</mosaic_0001>

<llo_original>
// kernel: tpu_custom_call.1
$region0: #{tpu_custom_call.1}
  #allocation0 [shape = 'u32[]', space=smem, size = 0x4, offset = 0x4, fixed_abs, tag = 'smem constant byte address 0x4 - core index']
  #allocation1 [shape = 'u32[144,128]{1,0:T(1,128)}', space=vmem, size = 0x12000, scoped, tag = 'internal scratch']
  #allocation2 [shape = 'f32[1,128]{1,0:T(1,128)}', space=vmem, size = 0x200, scoped, tag = 'scratch operand']
  %s0 = inlined_call_operand.vmem [shape: bf16[2,256,4], index: 0, kind: input, shape index: {}]
  %s1 = inlined_call_operand.vmem [shape: bf16[4,128], index: 1, kind: input, shape index: {}]
  %s2 = inlined_call_operand.vmem [shape: f32[1,128], index: 2, kind: input, shape index: {}]
  %s3 = inlined_call_operand.vmem [shape: bf16[128,128], index: 3, kind: input, shape index: {}]
  %s4 = inlined_call_operand.vmem [shape: f32[1,128], index: 4, kind: input, shape index: {}]
  %s5 = inlined_call_operand.vmem [shape: bf16[128,128], index: 5, kind: input, shape index: {}]
  %s6 = inlined_call_operand.vmem [shape: f32[1,128], index: 6, kind: input, shape index: {}]
  %s7 = inlined_call_operand.hbm [shape: f32[2,1,128], index: 7, kind: output, shape index: {}]
  %s8 = sld [smem:[#allocation0]]
  $region69: #{tpu_custom_call.1} parent=0
    _
  %s10 = ssub.s32 1, %s8
  %s11 = scalar_select 0, %s10, %s8
  $region1: #{tpu_custom_call.1} parent=0
    #allocation3 [shape = 'u8[1024]{0}', space=vmem, size = 0x400, scoped, tag = 'output window, operand 0']
    #allocation4 [shape = 's32[2]{0}', space=sflag, size = 0x8, scoped, tag = 'scoped memory for tpu_custom_call.1']
    %12 = vsyncpa [#allocation4], 0
    %s13 = scalar_lea.sflag [#allocation4], 1
    %14 = vsyncpa %s13, 0
    loop: start=0, step=1, limit=10
    $region2: #{tpu_custom_call.1} parent=1 // loop_pre_header
      _
    $region3: #{tpu_custom_call.1} parent=1 // loop_header
      %s16 = sphi 0, %s20
      %p17 = scmp.ge.s32.totalorder %s16, 10
      %s23 = sphi 0, %s35
      %s24 = sphi 0, %s31
      %s25 = sphi 0, %s23
      %s26 = sphi 0, %s24
      %s27 = sphi 0, %s25
      %s28 = sphi 0, %s26
      %s40 = sphi 0, %s42
      %s43 = sphi 0, %s40
      %s44 = sphi 0, %s43
      %s60 = sphi 0, %s44
      %s64 = sphi 0, %s64
      %s66 = sphi 0, %s64
      %s67 = sphi 0, %s66
      %s81 = sphi 0, %s67
      %s85 = sphi 0, %s85
      %s87 = sphi 0, %s85
      %s88 = sphi 0, %s87
      %s102 = sphi 0, %s88
      %s106 = sphi 0, %s106
      %s108 = sphi 0, %s106
      %s109 = sphi 0, %s108
      %s123 = sphi 0, %s109
      %s127 = sphi 0, %s127
      %s129 = sphi 0, %s127
      %s130 = sphi 0, %s129
      %s144 = sphi 0, %s130
      %s148 = sphi 0, %s148
      %s150 = sphi 0, %s148
      %s151 = sphi 0, %s150
      %s165 = sphi 0, %s151
      %s169 = sphi 0, %s169
      %s171 = sphi 0, %s169
      %s172 = sphi 0, %s171
      %s186 = sphi 0, %s172
      %s192 = sphi 0, %s194
      %s195 = sphi 0, %s192
      %s196 = sphi 0, %s195
      %s212 = sphi 0, %s196
    $region4: #{tpu_custom_call.1} parent=1 // loop_header_branch
      %19 = sbr.rel (%p17) target = $region8
    $region5: #{tpu_custom_call.1} parent=1 // loop_body
      %s21 = ssub.s32 %s16, 1
      %s22 = ssub.s32 %s16, 2
      %s29 = sadd.s32 1, %s24
      %p30 = scmp.ge.s32.totalorder %s29, 4
      %s31 = scalar_select %p30, 0, %s29
      %s32 = sadd.s32 1, %s23
      %s33 = scalar_select %p30, %s32, %s23
      %p34 = scmp.ge.s32.totalorder %s33, 2
      %s35 = scalar_select %p34, 0, %s33
      %s36 = ssub.s32 %s23, %s35
      %s37 = ssub.s32 %s24, %s31
      %s38 = sor.u32 %s36, %s37
      %p39 = scmp.eq.s32.totalorder %s38, 0
      %s41 = sadd.s32 %s40, 1
      %s42 = scalar_select %p39, %s40, %s41
      %p45 = pneg %p39
      %p46 = scmp.eq.s32.totalorder %s16, 7
      %p47 = por %p45, %p46
      %p48 = scmp.ne.s32.totalorder %s40, %s43
      %p49 = scmp.eq.s32.totalorder %s16, 0
      %p50 = por %p48, %p49
      %p51 = scmp.ne.s32.totalorder %s40, %s43
      %p52 = scmp.eq.s32.totalorder %s21, 7
      %p53 = por %p51, %p52
      %p54 = scmp.ne.s32.totalorder %s43, %s44
      %p55 = scmp.eq.s32.totalorder %s21, 0
      %p56 = por %p54, %p55
      %p57 = scmp.ne.s32.totalorder %s43, %s44
      %p58 = scmp.eq.s32.totalorder %s22, 7
      %p59 = por %p57, %p58
      %p61 = scmp.ne.s32.totalorder %s44, %s60
      %p62 = scmp.eq.s32.totalorder %s22, 0
      %p63 = por %p61, %p62
      %s65 = sadd.s32 %s64, 1
      %p68 = scmp.eq.s32.totalorder %s16, 7
      %p69 = scmp.ne.s32.totalorder %s64, %s66
      %p70 = scmp.eq.s32.totalorder %s16, 0
      %p71 = por %p69, %p70
      %p72 = scmp.ne.s32.totalorder %s64, %s66
      %p73 = scmp.eq.s32.totalorder %s21, 7
      %p74 = por %p72, %p73
      %p75 = scmp.ne.s32.totalorder %s66, %s67
      %p76 = scmp.eq.s32.totalorder %s21, 0
      %p77 = por %p75, %p76
      %p78 = scmp.ne.s32.totalorder %s66, %s67
      %p79 = scmp.eq.s32.totalorder %s22, 7
      %p80 = por %p78, %p79
      %p82 = scmp.ne.s32.totalorder %s67, %s81
      %p83 = scmp.eq.s32.totalorder %s22, 0
      %p84 = por %p82, %p83
      %s86 = sadd.s32 %s85, 1
      %p89 = scmp.eq.s32.totalorder %s16, 7
      %p90 = scmp.ne.s32.totalorder %s85, %s87
      %p91 = scmp.eq.s32.totalorder %s16, 0
      %p92 = por %p90, %p91
      %p93 = scmp.ne.s32.totalorder %s85, %s87
      %p94 = scmp.eq.s32.totalorder %s21, 7
      %p95 = por %p93, %p94
      %p96 = scmp.ne.s32.totalorder %s87, %s88
      %p97 = scmp.eq.s32.totalorder %s21, 0
      %p98 = por %p96, %p97
      %p99 = scmp.ne.s32.totalorder %s87, %s88
      %p100 = scmp.eq.s32.totalorder %s22, 7
      %p101 = por %p99, %p100
      %p103 = scmp.ne.s32.totalorder %s88, %s102
      %p104 = scmp.eq.s32.totalorder %s22, 0
      %p105 = por %p103, %p104
      %s107 = sadd.s32 %s106, 1
      %p110 = scmp.eq.s32.totalorder %s16, 7
      %p111 = scmp.ne.s32.totalorder %s106, %s108
      %p112 = scmp.eq.s32.totalorder %s16, 0
      %p113 = por %p111, %p112
      %p114 = scmp.ne.s32.totalorder %s106, %s108
      %p115 = scmp.eq.s32.totalorder %s21, 7
      %p116 = por %p114, %p115
      %p117 = scmp.ne.s32.totalorder %s108, %s109
      %p118 = scmp.eq.s32.totalorder %s21, 0
      %p119 = por %p117, %p118
      %p120 = scmp.ne.s32.totalorder %s108, %s109
      %p121 = scmp.eq.s32.totalorder %s22, 7
      %p122 = por %p120, %p121
      %p124 = scmp.ne.s32.totalorder %s109, %s123
      %p125 = scmp.eq.s32.totalorder %s22, 0
      %p126 = por %p124, %p125
      %s128 = sadd.s32 %s127, 1
      %p131 = scmp.eq.s32.totalorder %s16, 7
      %p132 = scmp.ne.s32.totalorder %s127, %s129
      %p133 = scmp.eq.s32.totalorder %s16, 0
      %p134 = por %p132, %p133
      %p135 = scmp.ne.s32.totalorder %s127, %s129
      %p136 = scmp.eq.s32.totalorder %s21, 7
      %p137 = por %p135, %p136
      %p138 = scmp.ne.s32.totalorder %s129, %s130
      %p139 = scmp.eq.s32.totalorder %s21, 0
      %p140 = por %p138, %p139
      %p141 = scmp.ne.s32.totalorder %s129, %s130
      %p142 = scmp.eq.s32.totalorder %s22, 7
      %p143 = por %p141, %p142
      %p145 = scmp.ne.s32.totalorder %s130, %s144
      %p146 = scmp.eq.s32.totalorder %s22, 0
      %p147 = por %p145, %p146
      %s149 = sadd.s32 %s148, 1
      %p152 = scmp.eq.s32.totalorder %s16, 7
      %p153 = scmp.ne.s32.totalorder %s148, %s150
      %p154 = scmp.eq.s32.totalorder %s16, 0
      %p155 = por %p153, %p154
      %p156 = scmp.ne.s32.totalorder %s148, %s150
      %p157 = scmp.eq.s32.totalorder %s21, 7
      %p158 = por %p156, %p157
      %p159 = scmp.ne.s32.totalorder %s150, %s151
      %p160 = scmp.eq.s32.totalorder %s21, 0
      %p161 = por %p159, %p160
      %p162 = scmp.ne.s32.totalorder %s150, %s151
      %p163 = scmp.eq.s32.totalorder %s22, 7
      %p164 = por %p162, %p163
      %p166 = scmp.ne.s32.totalorder %s151, %s165
      %p167 = scmp.eq.s32.totalorder %s22, 0
      %p168 = por %p166, %p167
      %s170 = sadd.s32 %s169, 1
      %p173 = scmp.eq.s32.totalorder %s16, 7
      %p174 = scmp.ne.s32.totalorder %s169, %s171
      %p175 = scmp.eq.s32.totalorder %s16, 0
      %p176 = por %p174, %p175
      %p177 = scmp.ne.s32.totalorder %s169, %s171
      %p178 = scmp.eq.s32.totalorder %s21, 7
      %p179 = por %p177, %p178
      %p180 = scmp.ne.s32.totalorder %s171, %s172
      %p181 = scmp.eq.s32.totalorder %s21, 0
      %p182 = por %p180, %p181
      %p183 = scmp.ne.s32.totalorder %s171, %s172
      %p184 = scmp.eq.s32.totalorder %s22, 7
      %p185 = por %p183, %p184
      %p187 = scmp.ne.s32.totalorder %s172, %s186
      %p188 = scmp.eq.s32.totalorder %s22, 0
      %p189 = por %p187, %p188
      %s190 = ssub.s32 %s23, %s35
      %p191 = scmp.eq.s32.totalorder %s190, 0
      %s193 = sadd.s32 %s192, 1
      %s194 = scalar_select %p191, %s192, %s193
      %p197 = pneg %p191
      %p198 = scmp.eq.s32.totalorder %s16, 7
      %p199 = por %p197, %p198
      %p200 = scmp.ne.s32.totalorder %s192, %s195
      %p201 = scmp.eq.s32.totalorder %s16, 0
      %p202 = por %p200, %p201
      %p203 = scmp.ne.s32.totalorder %s192, %s195
      %p204 = scmp.eq.s32.totalorder %s21, 7
      %p205 = por %p203, %p204
      %p206 = scmp.ne.s32.totalorder %s195, %s196
      %p207 = scmp.eq.s32.totalorder %s21, 0
      %p208 = por %p206, %p207
      %p209 = scmp.ne.s32.totalorder %s195, %s196
      %p210 = scmp.eq.s32.totalorder %s22, 7
      %p211 = por %p209, %p210
      %p213 = scmp.ne.s32.totalorder %s196, %s212
      %p214 = scmp.eq.s32.totalorder %s22, 0
      %p215 = por %p213, %p214
      %p216 = scmp.le.s32.totalorder 1, %s16
      %p217 = scmp.lt.s32.totalorder %s16, 9
      %p218 = pnand %p216, %p217
      %p219 = pneg %p218
      // Predicated region
      $region9: #{tpu_custom_call.1} parent=5 // pred_check
        _
      $region10: #{tpu_custom_call.1} parent=5 // pred_check_branch
        %221 = sbr.rel (%p218) target = $region12
      $region11: #{tpu_custom_call.1} parent=5 // pred_region
        %s222 = ssub.s32 %s16, 1
        // Predicated region
        $region13: #{tpu_custom_call.1} parent=11 // pred_check
          %p223 = pneg %p77
        $region14: #{tpu_custom_call.1} parent=11 // pred_check_branch
          %225 = sbr.rel (%p223) target = $region16
        $region15: #{tpu_custom_call.1} parent=11 // pred_region
          _
        $region16: #{tpu_custom_call.1} parent=11 // pred_fallthru
          _
        // Predicated region
        $region17: #{tpu_custom_call.1} parent=11 // pred_check
          %p226 = pneg %p98
        $region18: #{tpu_custom_call.1} parent=11 // pred_check_branch
          %228 = sbr.rel (%p226) target = $region20
        $region19: #{tpu_custom_call.1} parent=11 // pred_region
          _
        $region20: #{tpu_custom_call.1} parent=11 // pred_fallthru
          _
        // Predicated region
        $region21: #{tpu_custom_call.1} parent=11 // pred_check
          %p229 = pneg %p119
        $region22: #{tpu_custom_call.1} parent=11 // pred_check_branch
          %231 = sbr.rel (%p229) target = $region24
        $region23: #{tpu_custom_call.1} parent=11 // pred_region
          _
        $region24: #{tpu_custom_call.1} parent=11 // pred_fallthru
          _
        // Predicated region
        $region25: #{tpu_custom_call.1} parent=11 // pred_check
          %p232 = pneg %p140
        $region26: #{tpu_custom_call.1} parent=11 // pred_check_branch
          %234 = sbr.rel (%p232) target = $region28
        $region27: #{tpu_custom_call.1} parent=11 // pred_region
          _
        $region28: #{tpu_custom_call.1} parent=11 // pred_fallthru
          _
        // Predicated region
        $region29: #{tpu_custom_call.1} parent=11 // pred_check
          %p235 = pneg %p161
        $region30: #{tpu_custom_call.1} parent=11 // pred_check_branch
          %237 = sbr.rel (%p235) target = $region32
        $region31: #{tpu_custom_call.1} parent=11 // pred_region
          _
        $region32: #{tpu_custom_call.1} parent=11 // pred_fallthru
          _
        // Predicated region
        $region33: #{tpu_custom_call.1} parent=11 // pred_check
          %p238 = pneg %p182
        $region34: #{tpu_custom_call.1} parent=11 // pred_check_branch
          %240 = sbr.rel (%p238) target = $region36
        $region35: #{tpu_custom_call.1} parent=11 // pred_region
          _
        $region36: #{tpu_custom_call.1} parent=11 // pred_fallthru
          _
      $region12: #{tpu_custom_call.1} parent=5 // pred_fallthru
        _
      %p241 = scmp.lt.s32.totalorder %s16, 8
      // Predicated region
      $region37: #{tpu_custom_call.1} parent=5 // pred_check
        %p242 = pneg %p241
      $region38: #{tpu_custom_call.1} parent=5 // pred_check_branch
        %244 = sbr.rel (%p242) target = $region40
      $region39: #{tpu_custom_call.1} parent=5 // pred_region
        // Predicated region
        $region41: #{tpu_custom_call.1} parent=39 // pred_check
          %p245 = pneg %p50
        $region42: #{tpu_custom_call.1} parent=39 // pred_check_branch
          %247 = sbr.rel (%p245) target = $region44
        $region43: #{tpu_custom_call.1} parent=39 // pred_region
          %s248 = smul.u32 8, %s24
          %p249 = scmp.lt.s32.totalorder %s23, 1
          %s250 = scalar_select %p249, %s23, 1
          %p251 = scmp.lt.s32.totalorder %s248, 31
          %s252 = scalar_select %p251, %s248, 31
          %s253 = smul.addr %s250, 32
          %s254 = sadd.s32 %s252, %s253
          %s255 = smul.addr %s254, 4
          %s256 = scalar_lea.vmem %s0, %s255
          %s257 = smul.u32 8, %s24
        $region44: #{tpu_custom_call.1} parent=39 // pred_fallthru
          _
      $region40: #{tpu_custom_call.1} parent=5 // pred_fallthru
        _
      %p258 = scmp.le.s32.totalorder 1, %s16
      %p259 = scmp.lt.s32.totalorder %s16, 9
      %p260 = pnand %p258, %p259
      %p261 = pneg %p260
      // Predicated region
      $region45: #{tpu_custom_call.1} parent=5 // pred_check
        _
      $region46: #{tpu_custom_call.1} parent=5 // pred_check_branch
        %263 = sbr.rel (%p260) target = $region48
      $region47: #{tpu_custom_call.1} parent=5 // pred_region
        %s264 = ssub.s32 %s16, 1
        %s265 = smul.u32 8, %s26
        %p266 = scmp.lt.s32.totalorder %s25, 1
        %s267 = scalar_select %p266, %s25, 1
        %p268 = scmp.lt.s32.totalorder %s265, 31
        %s269 = scalar_select %p268, %s265, 31
        %s270 = smul.addr %s267, 32
        %s271 = sadd.s32 %s269, %s270
        %s272 = smul.addr %s271, 4
        %s273 = scalar_lea.vmem %s0, %s272
        %p274 = pneg %p56
        %p275 = pneg %p53
        %p276 = pneg %p77
        %p277 = pneg %p74
        %p278 = pneg %p98
        %p279 = pneg %p95
        %p280 = pneg %p119
        %p281 = pneg %p116
        %p282 = pneg %p140
        %p283 = pneg %p137
        %p284 = pneg %p161
        %p285 = pneg %p158
        %p286 = pneg %p182
        %p287 = pneg %p179
        %p288 = pneg %p208
        %p289 = pneg %p205
        %s290 = sand.u32 %s195, 1
        %s291 = scalar_lea.sflag [#allocation4], %s290
        %s292 = sand.u32 %s195, 1
        %s293 = scalar_lea.vmem [#allocation3], %s292
        %s294 = smul.u32 8, %s26
        %p295 = scmp.lt.s32.totalorder %s25, 1
        %s296 = scalar_select %p295, %s25, 1
        %p297 = scmp.lt.s32.totalorder %s294, 31
        %s298 = scalar_select %p297, %s294, 31
        %s299 = smul.addr %s296, 32
        %s300 = sadd.s32 %s298, %s299
        %s301 = smul.addr %s300, 4
        %s302 = scalar_lea.vmem %s0, %s301
        %s303 = smul.u32 8, %s26
        %p304 = scmp.eq.s32.totalorder %s26, 0
        // Predicated region
        $region49: #{tpu_custom_call.1} parent=47 // pred_check
          %p305 = pneg %p304
        $region50: #{tpu_custom_call.1} parent=47 // pred_check_branch
          %307 = sbr.rel (%p305) target = $region52
        $region51: #{tpu_custom_call.1} parent=47 // pred_region
          %308 = vst [vmem:[#allocation2] sm:$0x1] 0.0
        $region52: #{tpu_custom_call.1} parent=47 // pred_fallthru
          _
        %v309 = vld [vmem:[%s302] sm:$0xf]
        %v310 = vld [vmem:[%s302 + $0x4] sm:$0xf]
        %v311 = vld [vmem:[%s302 + $0x8] sm:$0xf]
        %v312 = vld [vmem:[%s302 + $0xc] sm:$0xf]
        %v313 = vld [vmem:[%s302 + $0x10] sm:$0xf]
        %v314 = vld [vmem:[%s302 + $0x14] sm:$0xf]
        %v315 = vld [vmem:[%s302 + $0x18] sm:$0xf]
        %v316 = vld [vmem:[%s302 + $0x1c] sm:$0xf]
        %v317 = vunpack.c.l.bf16 %v309
        %v318 = vunpack.c.l.bf16 %v310
        %v319 = vunpack.c.l.bf16 %v311
        %v320 = vunpack.c.l.bf16 %v312
        %v321 = vunpack.c.l.bf16 %v313
        %v322 = vunpack.c.l.bf16 %v314
        %v323 = vunpack.c.l.bf16 %v315
        %v324 = vunpack.c.l.bf16 %v316
        %v325 = vld [vmem:[%s1] sm:$0x3]
        %v326 = vunpack.c.l.bf16 %v325
        %328 = vset.pattern.permute.xlu0 0
        %329 = vperm.xlu0 %328, %v317
        %v330 = vpop.permute.xlu0 %329
        %333 = vset.pattern.permute.xlu0 0
        %334 = vperm.xlu0 %333, %v318
        %v335 = vpop.permute.xlu0 %334
        %338 = vset.pattern.permute.xlu0 0
        %339 = vperm.xlu0 %338, %v319
        %v340 = vpop.permute.xlu0 %339
        %343 = vset.pattern.permute.xlu0 0
        %344 = vperm.xlu0 %343, %v320
        %v345 = vpop.permute.xlu0 %344
        %348 = vset.pattern.permute.xlu0 0
        %349 = vperm.xlu0 %348, %v321
        %v350 = vpop.permute.xlu0 %349
        %353 = vset.pattern.permute.xlu0 0
        %354 = vperm.xlu0 %353, %v322
        %v355 = vpop.permute.xlu0 %354
        %358 = vset.pattern.permute.xlu0 0
        %359 = vperm.xlu0 %358, %v323
        %v360 = vpop.permute.xlu0 %359
        %363 = vset.pattern.permute.xlu0 0
        %364 = vperm.xlu0 %363, %v324
        %v365 = vpop.permute.xlu0 %364
        %v367 = vlaneseq
        %v368 = vshrl.u32 %v367, 7
        %v369 = vsub.s32 0, %v368
        %v370 = vrot.slane %v326, %v369
        %v371 = vmul.f32 %v330, %v370
        %v372 = vmul.f32 %v335, %v370
        %v373 = vmul.f32 %v340, %v370
        %v374 = vmul.f32 %v345, %v370
        %v375 = vmul.f32 %v350, %v370
        %v376 = vmul.f32 %v355, %v370
        %v377 = vmul.f32 %v360, %v370
        %v378 = vmul.f32 %v365, %v370
        %379 = vset.pattern.permute.xlu0 1
        %380 = vperm.xlu0 %379, %v317
        %v381 = vpop.permute.xlu0 %380
        %383 = vset.pattern.permute.xlu0 1
        %384 = vperm.xlu0 %383, %v318
        %v385 = vpop.permute.xlu0 %384
        %387 = vset.pattern.permute.xlu0 1
        %388 = vperm.xlu0 %387, %v319
        %v389 = vpop.permute.xlu0 %388
        %391 = vset.pattern.permute.xlu0 1
        %392 = vperm.xlu0 %391, %v320
        %v393 = vpop.permute.xlu0 %392
        %395 = vset.pattern.permute.xlu0 1
        %396 = vperm.xlu0 %395, %v321
        %v397 = vpop.permute.xlu0 %396
        %399 = vset.pattern.permute.xlu0 1
        %400 = vperm.xlu0 %399, %v322
        %v401 = vpop.permute.xlu0 %400
        %403 = vset.pattern.permute.xlu0 1
        %404 = vperm.xlu0 %403, %v323
        %v405 = vpop.permute.xlu0 %404
        %407 = vset.pattern.permute.xlu0 1
        %408 = vperm.xlu0 %407, %v324
        %v409 = vpop.permute.xlu0 %408
        %v411 = vlaneseq
        %v412 = vshrl.u32 %v411, 7
        %v413 = vsub.s32 1, %v412
        %v414 = vrot.slane %v326, %v413
        %v415 = vmul.f32 %v381, %v414
        %v416 = vmul.f32 %v385, %v414
        %v417 = vmul.f32 %v389, %v414
        %v418 = vmul.f32 %v393, %v414
        %v419 = vmul.f32 %v397, %v414
        %v420 = vmul.f32 %v401, %v414
        %v421 = vmul.f32 %v405, %v414
        %v422 = vmul.f32 %v409, %v414
        %v423 = vadd.f32 %v371, %v415
        %v424 = vadd.f32 %v372, %v416
        %v425 = vadd.f32 %v373, %v417
        %v426 = vadd.f32 %v374, %v418
        %v427 = vadd.f32 %v375, %v419
        %v428 = vadd.f32 %v376, %v420
        %v429 = vadd.f32 %v377, %v421
        %v430 = vadd.f32 %v378, %v422
        %431 = vset.pattern.permute.xlu0 2
        %432 = vperm.xlu0 %431, %v317
        %v433 = vpop.permute.xlu0 %432
        %435 = vset.pattern.permute.xlu0 2
        %436 = vperm.xlu0 %435, %v318
        %v437 = vpop.permute.xlu0 %436
        %439 = vset.pattern.permute.xlu0 2
        %440 = vperm.xlu0 %439, %v319
        %v441 = vpop.permute.xlu0 %440
        %443 = vset.pattern.permute.xlu0 2
        %444 = vperm.xlu0 %443, %v320
        %v445 = vpop.permute.xlu0 %444
        %447 = vset.pattern.permute.xlu0 2
        %448 = vperm.xlu0 %447, %v321
        %v449 = vpop.permute.xlu0 %448
        %451 = vset.pattern.permute.xlu0 2
        %452 = vperm.xlu0 %451, %v322
        %v453 = vpop.permute.xlu0 %452
        %455 = vset.pattern.permute.xlu0 2
        %456 = vperm.xlu0 %455, %v323
        %v457 = vpop.permute.xlu0 %456
        %459 = vset.pattern.permute.xlu0 2
        %460 = vperm.xlu0 %459, %v324
        %v461 = vpop.permute.xlu0 %460
        %v463 = vlaneseq
        %v464 = vshrl.u32 %v463, 7
        %v465 = vsub.s32 2, %v464
        %v466 = vrot.slane %v326, %v465
        %v467 = vmul.f32 %v433, %v466
        %v468 = vmul.f32 %v437, %v466
        %v469 = vmul.f32 %v441, %v466
        %v470 = vmul.f32 %v445, %v466
        %v471 = vmul.f32 %v449, %v466
        %v472 = vmul.f32 %v453, %v466
        %v473 = vmul.f32 %v457, %v466
        %v474 = vmul.f32 %v461, %v466
        %v475 = vadd.f32 %v423, %v467
        %v476 = vadd.f32 %v424, %v468
        %v477 = vadd.f32 %v425, %v469
        %v478 = vadd.f32 %v426, %v470
        %v479 = vadd.f32 %v427, %v471
        %v480 = vadd.f32 %v428, %v472
        %v481 = vadd.f32 %v429, %v473
        %v482 = vadd.f32 %v430, %v474
        %483 = vset.pattern.permute.xlu0 3
        %484 = vperm.xlu0 %483, %v317
        %v485 = vpop.permute.xlu0 %484
        %487 = vset.pattern.permute.xlu0 3
        %488 = vperm.xlu0 %487, %v318
        %v489 = vpop.permute.xlu0 %488
        %491 = vset.pattern.permute.xlu0 3
        %492 = vperm.xlu0 %491, %v319
        %v493 = vpop.permute.xlu0 %492
        %495 = vset.pattern.permute.xlu0 3
        %496 = vperm.xlu0 %495, %v320
        %v497 = vpop.permute.xlu0 %496
        %499 = vset.pattern.permute.xlu0 3
        %500 = vperm.xlu0 %499, %v321
        %v501 = vpop.permute.xlu0 %500
        %503 = vset.pattern.permute.xlu0 3
        %504 = vperm.xlu0 %503, %v322
        %v505 = vpop.permute.xlu0 %504
        %507 = vset.pattern.permute.xlu0 3
        %508 = vperm.xlu0 %507, %v323
        %v509 = vpop.permute.xlu0 %508
        %511 = vset.pattern.permute.xlu0 3
        %512 = vperm.xlu0 %511, %v324
        %v513 = vpop.permute.xlu0 %512
        %v515 = vlaneseq
        %v516 = vshrl.u32 %v515, 7
        %v517 = vsub.s32 3, %v516
        %v518 = vrot.slane %v326, %v517
        %v519 = vmul.f32 %v485, %v518
        %v520 = vmul.f32 %v489, %v518
        %v521 = vmul.f32 %v493, %v518
        %v522 = vmul.f32 %v497, %v518
        %v523 = vmul.f32 %v501, %v518
        %v524 = vmul.f32 %v505, %v518
        %v525 = vmul.f32 %v509, %v518
        %v526 = vmul.f32 %v513, %v518
        %v527 = vadd.f32 %v475, %v519
        %v528 = vadd.f32 %v476, %v520
        %v529 = vadd.f32 %v477, %v521
        %v530 = vadd.f32 %v478, %v522
        %v531 = vadd.f32 %v479, %v523
        %v532 = vadd.f32 %v480, %v524
        %v533 = vadd.f32 %v481, %v525
        %v534 = vadd.f32 %v482, %v526
        %v535 = vld [vmem:[%s2] sm:$0x1]
        %v537 = vlaneseq
        %v538 = vshrl.u32 %v537, 7
        %v539 = vsub.s32 0, %v538
        %v540 = vrot.slane %v535, %v539
        %v542 = vadd.f32 %v527, %v540
        %v543 = vadd.f32 %v528, %v540
        %v544 = vadd.f32 %v529, %v540
        %v545 = vadd.f32 %v530, %v540
        %v546 = vadd.f32 %v531, %v540
        %v547 = vadd.f32 %v532, %v540
        %v548 = vadd.f32 %v533, %v540
        %v549 = vadd.f32 %v534, %v540
        %v550 = vmax.f32 %v542, 0.0
        %v551 = vmax.f32 %v543, 0.0
        %v552 = vmax.f32 %v544, 0.0
        %v553 = vmax.f32 %v545, 0.0
        %v554 = vmax.f32 %v546, 0.0
        %v555 = vmax.f32 %v547, 0.0
        %v556 = vmax.f32 %v548, 0.0
        %v557 = vmax.f32 %v549, 0.0
        %v558 = vld [vmem:[#allocation2] sm:$0x1]
        %v559 = vadd.f32 %v550, %v551
        %v560 = vadd.f32 %v559, %v552
        %v561 = vadd.f32 %v560, %v553
        %v562 = vadd.f32 %v561, %v554
        %v563 = vadd.f32 %v562, %v555
        %v564 = vadd.f32 %v563, %v556
        %v565 = vadd.f32 %v564, %v557
        %v566 = vrot.slane %v565, 4
        %v567 = vadd.f32 %v565, %v566
        %v568 = vrot.slane %v567, 2
        %v569 = vadd.f32 %v567, %v568
        %v570 = vrot.slane %v569, 1
        %v571 = vadd.f32 %v569, %v570
        %v572 = vadd.f32 %v558, %v571
        %573 = vst [vmem:[#allocation2] sm:$0x1] %v572
        %p574 = scmp.eq.s32.totalorder %s26, 3
        // Predicated region
        $region53: #{tpu_custom_call.1} parent=47 // pred_check
          %p575 = pneg %p574
        $region54: #{tpu_custom_call.1} parent=47 // pred_check_branch
          %577 = sbr.rel (%p575) target = $region56
        $region55: #{tpu_custom_call.1} parent=47 // pred_region
          %v578 = vld [vmem:[#allocation2] sm:$0x1]
          %v579 = vmul.f32 %v578, 0.00390625
          %v580 = vld [vmem:[%s3] sm:$0xf]
          %v581 = vld [vmem:[%s3 + $0x4] sm:$0xf]
          %v582 = vld [vmem:[%s3 + $0x8] sm:$0xf]
          %v583 = vld [vmem:[%s3 + $0xc] sm:$0xf]
          %v584 = vld [vmem:[%s3 + $0x10] sm:$0xf]
          %v585 = vld [vmem:[%s3 + $0x14] sm:$0xf]
          %v586 = vld [vmem:[%s3 + $0x18] sm:$0xf]
          %v587 = vld [vmem:[%s3 + $0x1c] sm:$0xf]
          %v588 = vld [vmem:[%s3 + $0x20] sm:$0xf]
          %v589 = vld [vmem:[%s3 + $0x24] sm:$0xf]
          %v590 = vld [vmem:[%s3 + $0x28] sm:$0xf]
          %v591 = vld [vmem:[%s3 + $0x2c] sm:$0xf]
          %v592 = vld [vmem:[%s3 + $0x30] sm:$0xf]
          %v593 = vld [vmem:[%s3 + $0x34] sm:$0xf]
          %v594 = vld [vmem:[%s3 + $0x38] sm:$0xf]
          %v595 = vld [vmem:[%s3 + $0x3c] sm:$0xf]
          %v596 = vunpack.c.l.bf16 %v580
          %v597 = vunpack.c.l.bf16 %v581
          %v598 = vunpack.c.l.bf16 %v582
          %v599 = vunpack.c.l.bf16 %v583
          %v600 = vunpack.c.l.bf16 %v584
          %v601 = vunpack.c.l.bf16 %v585
          %v602 = vunpack.c.l.bf16 %v586
          %v603 = vunpack.c.l.bf16 %v587
          %v604 = vunpack.c.l.bf16 %v588
          %v605 = vunpack.c.l.bf16 %v589
          %v606 = vunpack.c.l.bf16 %v590
          %v607 = vunpack.c.l.bf16 %v591
          %v608 = vunpack.c.l.bf16 %v592
          %v609 = vunpack.c.l.bf16 %v593
          %v610 = vunpack.c.l.bf16 %v594
          %v611 = vunpack.c.l.bf16 %v595
          %v612 = vld [vmem:[%s4] sm:$0x1]
          %613 = vmatprep.subr.mxu0 0.0
          %614 = vmatpush1.msra.mxu0 %v596
          %615 = vmatprep.subr.mxu0 0.0
          %616 = vmatpush1.msra.mxu0 %v597
          %617 = vmatprep.subr.mxu0 0.0
          %618 = vmatpush1.msra.mxu0 %v598
          %619 = vmatprep.subr.mxu0 0.0
          %620 = vmatpush1.msra.mxu0 %v599
          %621 = vmatprep.subr.mxu0 0.0
          %622 = vmatpush1.msra.mxu0 %v600
          %623 = vmatprep.subr.mxu0 0.0
          %624 = vmatpush1.msra.mxu0 %v601
          %625 = vmatprep.subr.mxu0 0.0
          %626 = vmatpush1.msra.mxu0 %v602
          %627 = vmatprep.subr.mxu0 0.0
          %628 = vmatpush1.msra.mxu0 %v603
          %629 = vmatprep.subr.mxu0 0.0
          %630 = vmatpush1.msra.mxu0 %v604
          %631 = vmatprep.subr.mxu0 0.0
          %632 = vmatpush1.msra.mxu0 %v605
          %633 = vmatprep.subr.mxu0 0.0
          %634 = vmatpush1.msra.mxu0 %v606
          %635 = vmatprep.subr.mxu0 0.0
          %636 = vmatpush1.msra.mxu0 %v607
          %637 = vmatprep.subr.mxu0 0.0
          %638 = vmatpush1.msra.mxu0 %v608
          %639 = vmatprep.subr.mxu0 0.0
          %640 = vmatpush1.msra.mxu0 %v609
          %641 = vmatprep.subr.mxu0 0.0
          %642 = vmatpush1.msra.mxu0 %v610
          %643 = vmatprep.subr.mxu0 0.0
          %644 = vmatpush1.msra.mxu0 %v611
          %645 = vmatprep.subr.mxu0 0.0
          %646 = vmatpush1.msra.mxu0 0.0
          %647 = vmatprep.subr.mxu0 0.0
          %648 = vmatpush1.msra.mxu0 0.0
          %649 = vmatprep.subr.mxu0 0.0
          %650 = vmatpush1.msra.mxu0 0.0
          %651 = vmatprep.subr.mxu0 0.0
          %652 = vmatpush1.msra.mxu0 0.0
          %653 = vmatprep.subr.mxu0 0.0
          %654 = vmatpush1.msra.mxu0 0.0
          %655 = vmatprep.subr.mxu0 0.0
          %656 = vmatpush1.msra.mxu0 0.0
          %657 = vmatprep.subr.mxu0 0.0
          %658 = vmatpush1.msra.mxu0 0.0
          %659 = vmatprep.subr.mxu0 0.0
          %660 = vmatpush1.msra.mxu0 0.0
          %661 = vmatprep.subr.mxu0 0.0
          %662 = vmatpush1.msra.mxu0 0.0
          %663 = vmatprep.subr.mxu0 0.0
          %664 = vmatpush1.msra.mxu0 0.0
          %665 = vmatprep.subr.mxu0 0.0
          %666 = vmatpush1.msra.mxu0 0.0
          %667 = vmatprep.subr.mxu0 0.0
          %668 = vmatpush1.msra.mxu0 0.0
          %669 = vmatprep.subr.mxu0 0.0
          %670 = vmatpush1.msra.mxu0 0.0
          %671 = vmatprep.subr.mxu0 0.0
          %672 = vmatpush1.msra.mxu0 0.0
          %673 = vmatprep.subr.mxu0 0.0
          %674 = vmatpush1.msra.mxu0 0.0
          %675 = vmatprep.subr.mxu0 0.0
          %676 = vmatpush1.msra.mxu0 0.0
          %677 = vmatprep.mubr.f32.mxu0 0.0
          %678 = vmatmul.mubr.f32.gmra.mrb[0].mxu0 %v579
          %v679 = vpop.f32.mrb[0].mxu0
          %v680 = vadd.f32 %v612, %v679
          %v681 = vpop.f32.mrb[0].mxu0
          %682 = vdwg.mxu0
          %v683 = vmax.f32 %v680, 0.0
          %v684 = vld [vmem:[%s5] sm:$0xf]
          %v685 = vld [vmem:[%s5 + $0x4] sm:$0xf]
          %v686 = vld [vmem:[%s5 + $0x8] sm:$0xf]
          %v687 = vld [vmem:[%s5 + $0xc] sm:$0xf]
          %v688 = vld [vmem:[%s5 + $0x10] sm:$0xf]
          %v689 = vld [vmem:[%s5 + $0x14] sm:$0xf]
          %v690 = vld [vmem:[%s5 + $0x18] sm:$0xf]
          %v691 = vld [vmem:[%s5 + $0x1c] sm:$0xf]
          %v692 = vld [vmem:[%s5 + $0x20] sm:$0xf]
          %v693 = vld [vmem:[%s5 + $0x24] sm:$0xf]
          %v694 = vld [vmem:[%s5 + $0x28] sm:$0xf]
          %v695 = vld [vmem:[%s5 + $0x2c] sm:$0xf]
          %v696 = vld [vmem:[%s5 + $0x30] sm:$0xf]
          %v697 = vld [vmem:[%s5 + $0x34] sm:$0xf]
          %v698 = vld [vmem:[%s5 + $0x38] sm:$0xf]
          %v699 = vld [vmem:[%s5 + $0x3c] sm:$0xf]
          %v700 = vunpack.c.l.bf16 %v684
          %v701 = vunpack.c.l.bf16 %v685
          %v702 = vunpack.c.l.bf16 %v686
          %v703 = vunpack.c.l.bf16 %v687
          %v704 = vunpack.c.l.bf16 %v688
          %v705 = vunpack.c.l.bf16 %v689
          %v706 = vunpack.c.l.bf16 %v690
          %v707 = vunpack.c.l.bf16 %v691
          %v708 = vunpack.c.l.bf16 %v692
          %v709 = vunpack.c.l.bf16 %v693
          %v710 = vunpack.c.l.bf16 %v694
          %v711 = vunpack.c.l.bf16 %v695
          %v712 = vunpack.c.l.bf16 %v696
          %v713 = vunpack.c.l.bf16 %v697
          %v714 = vunpack.c.l.bf16 %v698
          %v715 = vunpack.c.l.bf16 %v699
          %v716 = vld [vmem:[%s6] sm:$0x1]
          %717 = vmatprep.subr.mxu0 0.0
          %718 = vmatpush1.msra.mxu0 %v700
          %719 = vmatprep.subr.mxu0 0.0
          %720 = vmatpush1.msra.mxu0 %v701
          %721 = vmatprep.subr.mxu0 0.0
          %722 = vmatpush1.msra.mxu0 %v702
          %723 = vmatprep.subr.mxu0 0.0
          %724 = vmatpush1.msra.mxu0 %v703
          %725 = vmatprep.subr.mxu0 0.0
          %726 = vmatpush1.msra.mxu0 %v704
          %727 = vmatprep.subr.mxu0 0.0
          %728 = vmatpush1.msra.mxu0 %v705
          %729 = vmatprep.subr.mxu0 0.0
          %730 = vmatpush1.msra.mxu0 %v706
          %731 = vmatprep.subr.mxu0 0.0
          %732 = vmatpush1.msra.mxu0 %v707
          %733 = vmatprep.subr.mxu0 0.0
          %734 = vmatpush1.msra.mxu0 %v708
          %735 = vmatprep.subr.mxu0 0.0
          %736 = vmatpush1.msra.mxu0 %v709
          %737 = vmatprep.subr.mxu0 0.0
          %738 = vmatpush1.msra.mxu0 %v710
          %739 = vmatprep.subr.mxu0 0.0
          %740 = vmatpush1.msra.mxu0 %v711
          %741 = vmatprep.subr.mxu0 0.0
          %742 = vmatpush1.msra.mxu0 %v712
          %743 = vmatprep.subr.mxu0 0.0
          %744 = vmatpush1.msra.mxu0 %v713
          %745 = vmatprep.subr.mxu0 0.0
          %746 = vmatpush1.msra.mxu0 %v714
          %747 = vmatprep.subr.mxu0 0.0
          %748 = vmatpush1.msra.mxu0 %v715
          %749 = vmatprep.subr.mxu0 0.0
          %750 = vmatpush1.msra.mxu0 0.0
          %751 = vmatprep.subr.mxu0 0.0
          %752 = vmatpush1.msra.mxu0 0.0
          %753 = vmatprep.subr.mxu0 0.0
          %754 = vmatpush1.msra.mxu0 0.0
          %755 = vmatprep.subr.mxu0 0.0
          %756 = vmatpush1.msra.mxu0 0.0
          %757 = vmatprep.subr.mxu0 0.0
          %758 = vmatpush1.msra.mxu0 0.0
          %759 = vmatprep.subr.mxu0 0.0
          %760 = vmatpush1.msra.mxu0 0.0
          %761 = vmatprep.subr.mxu0 0.0
          %762 = vmatpush1.msra.mxu0 0.0
          %763 = vmatprep.subr.mxu0 0.0
          %764 = vmatpush1.msra.mxu0 0.0
          %765 = vmatprep.subr.mxu0 0.0
          %766 = vmatpush1.msra.mxu0 0.0
          %767 = vmatprep.subr.mxu0 0.0
          %768 = vmatpush1.msra.mxu0 0.0
          %769 = vmatprep.subr.mxu0 0.0
          %770 = vmatpush1.msra.mxu0 0.0
          %771 = vmatprep.subr.mxu0 0.0
          %772 = vmatpush1.msra.mxu0 0.0
          %773 = vmatprep.subr.mxu0 0.0
          %774 = vmatpush1.msra.mxu0 0.0
          %775 = vmatprep.subr.mxu0 0.0
          %776 = vmatpush1.msra.mxu0 0.0
          %777 = vmatprep.subr.mxu0 0.0
          %778 = vmatpush1.msra.mxu0 0.0
          %779 = vmatprep.subr.mxu0 0.0
          %780 = vmatpush1.msra.mxu0 0.0
          %781 = vmatprep.mubr.f32.mxu0 0.0
          %782 = vmatmul.mubr.f32.gmra.mrb[0].mxu0 %v683
          %v783 = vpop.f32.mrb[0].mxu0
          %v784 = vadd.f32 %v716, %v783
          %v785 = vpop.f32.mrb[0].mxu0
          %786 = vdwg.mxu0
          %787 = vst [vmem:[%s293] sm:$0x1] %v784
        $region56: #{tpu_custom_call.1} parent=47 // pred_fallthru
          _
        %s788 = sand.u32 %s195, 1
        %s789 = scalar_lea.sflag [#allocation4], %s788
        %s790 = sand.u32 %s195, 1
        %s791 = scalar_lea.vmem [#allocation3], %s790
        // Predicated region
        $region57: #{tpu_custom_call.1} parent=47 // pred_check
          %p792 = pneg %p205
        $region58: #{tpu_custom_call.1} parent=47 // pred_check_branch
          %794 = sbr.rel (%p792) target = $region60
        $region59: #{tpu_custom_call.1} parent=47 // pred_region
          %s796 = ssub.s32 16, 16
          %797 = vsyncadd %s789, %s796
          %s798 = smul.addr %s25, 16
          %s799 = scalar_lea.hbm %s7, %s798
          %s801 = sshll.u32 %s791, 4
          %s802 = int_to_ptr.vmem [resolvable:$true] %s801
          %804 = dma.vmem_to_hbm [thread:$0]  %s802, 16, %s799, %s789
        $region60: #{tpu_custom_call.1} parent=47 // pred_fallthru
          _
      $region48: #{tpu_custom_call.1} parent=5 // pred_fallthru
        _
      %p805 = scmp.le.s32.totalorder 2, %s16
      // Predicated region
      $region61: #{tpu_custom_call.1} parent=5 // pred_check
        %p806 = pneg %p805
      $region62: #{tpu_custom_call.1} parent=5 // pred_check_branch
        %808 = sbr.rel (%p806) target = $region64
      $region63: #{tpu_custom_call.1} parent=5 // pred_region
        %s809 = ssub.s32 %s16, 2
        // Predicated region
        $region65: #{tpu_custom_call.1} parent=63 // pred_check
          %p810 = pneg %p211
        $region66: #{tpu_custom_call.1} parent=63 // pred_check_branch
          %812 = sbr.rel (%p810) target = $region68
        $region67: #{tpu_custom_call.1} parent=63 // pred_region
          %s813 = sand.u32 %s196, 1
          %s814 = scalar_lea.sflag [#allocation4], %s813
          %s815 = sand.u32 %s196, 1
          %s816 = scalar_lea.vmem [#allocation3], %s815
          %817 = dma.done %s814, 16
        $region68: #{tpu_custom_call.1} parent=63 // pred_fallthru
          _
      $region64: #{tpu_custom_call.1} parent=5 // pred_fallthru
        _
    $region6: #{tpu_custom_call.1} parent=1 // loop_footer
      %s20 = sadd.s32 1, %s16
    $region7: #{tpu_custom_call.1} parent=1 // loop_footer_branch
      %15 = sbr.rel target = $region3
    $region8: #{tpu_custom_call.1} parent=1 // loop_exit
      _
    %818 = vsyncpa [#allocation4], 1
    %s819 = scalar_lea.sflag [#allocation4], 1
    %820 = vsyncpa %s819, 1

</llo_original>
